<compile_context>
chip_gen: v7x
topology: tpu7x:2x2x1
jax: 0.10.0
libtpu: 0.0.40
codegen_flags: <defaults>
</compile_context>

<pallas_src>
import jax
import jax.numpy as jnp
from jax.experimental import pallas as pl
from jax.experimental.pallas import tpu as pltpu

# layer dims for node_num = [[32, 64], [64, 32]]: 93 -> 32 -> 64 -> 32 -> 9
_DIMS = [(93, 32), (32, 64), (64, 32), (32, 9)]
_N_FEATURES = 93
_N_CLASSES = 9

_TILE_B = 8192            # max batch rows per grid step (multiple of 8)
_SINGLE_STEP_MAX = 4096   # below this many rows, use a single grid step


def _round8(n):
    return ((n + 7) // 8) * 8


def _choose_tile(B):
    """Pick the batch tile: big enough to amortize per-step overhead, but with
    >= 2 grid steps for large B so v7x's two TensorCores both get work."""
    rounded = _round8(B)
    if rounded <= _SINGLE_STEP_MAX:
        return rounded                      # grid = (1,): overhead-dominated regime
    half = _round8((B + 1) // 2)            # guarantees at least 2 grid steps
    return min(_TILE_B, half)


def _vmem_budget_bytes(tile_b):
    """Explicit VMEM budget: 2x x-block + 2x2 output blocks + pinned weights
    + f32 intermediates (with 2x headroom)."""
    itm = 4  # f32
    x_blocks = 2 * tile_b * _N_FEATURES * itm
    out_blocks = 2 * 2 * tile_b * _N_CLASSES * itm
    weights = 2 * sum(fi * fo + fo for fi, fo in _DIMS) * itm
    inter = 2 * tile_b * (32 + 64 + 32 + 2 * _N_CLASSES) * itm
    return x_blocks + out_blocks + weights + inter


def _otto_mlp_kernel(x_ref,
                     w1_ref, b1_ref,
                     w2_ref, b2_ref,
                     w3_ref, b3_ref,
                     w4_ref, b4_ref,
                     logits_ref, probas_ref):
    """One batch tile: 3x (Linear + ReLU), final Linear, stable softmax.
    All math in f32 (matches the PyTorch module's forward)."""
    h = x_ref[...]                                                   # (TILE_B, 93)

    # hidden 1: (TILE_B,93) @ (93,32) + (1,32), ReLU
    h = jnp.dot(h, w1_ref[...], preferred_element_type=jnp.float32) + b1_ref[...]
    h = jnp.maximum(h, 0.0)

    # hidden 2: (TILE_B,32) @ (32,64) + (1,64), ReLU
    h = jnp.dot(h, w2_ref[...], preferred_element_type=jnp.float32) + b2_ref[...]
    h = jnp.maximum(h, 0.0)

    # hidden 3: (TILE_B,64) @ (64,32) + (1,32), ReLU
    h = jnp.dot(h, w3_ref[...], preferred_element_type=jnp.float32) + b3_ref[...]
    h = jnp.maximum(h, 0.0)

    # output: (TILE_B,32) @ (32,9) + (1,9)
    logits = jnp.dot(h, w4_ref[...], preferred_element_type=jnp.float32) + b4_ref[...]
    logits_ref[...] = logits

    # numerically-stable softmax with exact normalization (rows sum to 1 at f32)
    m = jnp.max(logits, axis=-1, keepdims=True)
    e = jnp.exp(logits - m)
    denom = jnp.sum(e, axis=-1, keepdims=True)
    probas_ref[...] = e / denom


@jax.jit
def otto_forward(x, params):
    """Returns (logits, probas), matching OttoClassifier.forward."""
    B, F = x.shape
    n_classes = params["w4"].shape[1]

    tile_b = _choose_tile(B)
    grid = (pl.cdiv(B, tile_b),)

    x_c = x.astype(jnp.float32)
    ws = [params[f"w{i}"].astype(jnp.float32) for i in range(1, 5)]
    bs = [params[f"b{i}"].astype(jnp.float32) for i in range(1, 5)]

    def _pinned(shape):
        # full-array block, constant block index -> fetched once, VMEM-resident
        return pl.BlockSpec(shape, lambda i: (0, 0))

    in_specs = [pl.BlockSpec((tile_b, F), lambda i: (i, 0))]
    for w, b in zip(ws, bs):
        in_specs.append(_pinned(w.shape))
        in_specs.append(_pinned(b.shape))

    out_specs = (
        pl.BlockSpec((tile_b, n_classes), lambda i: (i, 0)),
        pl.BlockSpec((tile_b, n_classes), lambda i: (i, 0)),
    )

    flops = 2 * B * sum(fi * fo for fi, fo in _DIMS)
    bytes_accessed = (
        B * F * 4                                          # x read
        + 2 * B * n_classes * 4                            # logits + probas write
        + sum(fi * fo + fo for fi, fo in _DIMS) * 4        # weights + biases
    )
    cost = pl.CostEstimate(flops=flops,
                           transcendentals=B * n_classes,
                           bytes_accessed=bytes_accessed)

    # explicit scoped-VMEM request (safe on every generation, fits v7x's 64 MiB)
    vmem_limit = min(64 << 20, max(16 << 20, 2 * _vmem_budget_bytes(tile_b)))

    operands = [x_c]
    for w, b in zip(ws, bs):
        operands.extend([w, b])

    logits, probas = pl.pallas_call(
        _otto_mlp_kernel,
        out_shape=(
            jax.ShapeDtypeStruct((B, n_classes), jnp.float32),
            jax.ShapeDtypeStruct((B, n_classes), jnp.float32),
        ),
        grid=grid,
        in_specs=in_specs,
        out_specs=out_specs,
        compiler_params=pltpu.CompilerParams(
            dimension_semantics=("parallel",),   # shards batch across v7x's 2 TCs
            vmem_limit_bytes=int(vmem_limit)),
        cost_estimate=cost,
    )(*operands)
    return logits, probas


def init_params(key):
    """Parameter init matching OttoClassifier(node_num=[[32,64],[64,32]]).
    Weights stored as (in, out) so the kernel computes x @ W + b."""
    params = {}
    for i, (fan_in, fan_out) in enumerate(_DIMS, start=1):
        key, kw, kb = jax.random.split(key, 3)
        bound = 1.0 / jnp.sqrt(fan_in)   # torch.nn.Linear default range
        params[f"w{i}"] = jax.random.uniform(
            kw, (fan_in, fan_out), jnp.float32, minval=-bound, maxval=bound)
        params[f"b{i}"] = jax.random.uniform(
            kb, (1, fan_out), jnp.float32, minval=-bound, maxval=bound)
    return params


def reference_forward(x, params):
    """Pure-JAX f32 reference (full-precision matmuls), mirroring the PyTorch
    forward exactly."""
    h = x.astype(jnp.float32)
    for i in range(1, 4):
        a = jnp.dot(h, params[f"w{i}"],
                    precision=jax.lax.Precision.HIGHEST) + params[f"b{i}"]
        h = jnp.maximum(a, 0.0)
    logits = jnp.dot(h, params["w4"],
                     precision=jax.lax.Precision.HIGHEST) + params["b4"]
    probas = jax.nn.softmax(logits, axis=-1)
    return logits, probas


if __name__ == "__main__":
    key = jax.random.PRNGKey(0)
    key, kx = jax.random.split(key)

    B = 8
    x = jax.random.normal(kx, (B, _N_FEATURES), dtype=jnp.float32)
    params = init_params(key)

    logits, probas = otto_forward(x, params)
    jax.block_until_ready((logits, probas))

    ref_logits, ref_probas = reference_forward(x, params)
    assert logits.shape == (B, _N_CLASSES) and probas.shape == (B, _N_CLASSES)
    assert jnp.allclose(logits, ref_logits, atol=1e-2, rtol=1e-2), (
        float(jnp.max(jnp.abs(logits - ref_logits))))
    assert jnp.allclose(probas, ref_probas, atol=5e-3, rtol=5e-3), (
        float(jnp.max(jnp.abs(probas - ref_probas))))
    assert jnp.allclose(jnp.sum(probas, axis=-1), 1.0, atol=1e-4)

    print("KERNEL_OK")
</pallas_src>

<mosaic_0001>
module attributes {stable_mosaic.version = 11 : i64} {
  func.func @_otto_mlp_kernel(%arg0: i32, %arg1: memref<8x93xf32, #tpu.memory_space<vmem>>, %arg2: memref<93x32xf32, #tpu.memory_space<vmem>>, %arg3: memref<1x32xf32, #tpu.memory_space<vmem>>, %arg4: memref<32x64xf32, #tpu.memory_space<vmem>>, %arg5: memref<1x64xf32, #tpu.memory_space<vmem>>, %arg6: memref<64x32xf32, #tpu.memory_space<vmem>>, %arg7: memref<1x32xf32, #tpu.memory_space<vmem>>, %arg8: memref<32x9xf32, #tpu.memory_space<vmem>>, %arg9: memref<1x9xf32, #tpu.memory_space<vmem>>, %arg10: memref<8x9xf32, #tpu.memory_space<vmem>>, %arg11: memref<8x9xf32, #tpu.memory_space<vmem>>) attributes {dimension_semantics = [#tpu.dimension_semantics<parallel>], iteration_bounds = array<i64: 1>, scalar_prefetch = 0 : i64, scratch_operands = 0 : i64, tpu.core_type = #tpu.core_type<tc>, window_params = [{transform_indices = @transform_0, window_bounds = array<i64: 8, 93>}, {pipeline_mode = #tpu.pipeline_mode<synchronous>, transform_indices = @transform_1, window_bounds = array<i64: 93, 32>}, {pipeline_mode = #tpu.pipeline_mode<synchronous>, transform_indices = @transform_2, window_bounds = array<i64: 1, 32>}, {pipeline_mode = #tpu.pipeline_mode<synchronous>, transform_indices = @transform_3, window_bounds = array<i64: 32, 64>}, {pipeline_mode = #tpu.pipeline_mode<synchronous>, transform_indices = @transform_4, window_bounds = array<i64: 1, 64>}, {pipeline_mode = #tpu.pipeline_mode<synchronous>, transform_indices = @transform_5, window_bounds = array<i64: 64, 32>}, {pipeline_mode = #tpu.pipeline_mode<synchronous>, transform_indices = @transform_6, window_bounds = array<i64: 1, 32>}, {pipeline_mode = #tpu.pipeline_mode<synchronous>, transform_indices = @transform_7, window_bounds = array<i64: 32, 9>}, {pipeline_mode = #tpu.pipeline_mode<synchronous>, transform_indices = @transform_8, window_bounds = array<i64: 1, 9>}, {transform_indices = @transform_9, window_bounds = array<i64: 8, 9>}, {transform_indices = @transform_10, window_bounds = array<i64: 8, 9>}]} {
    %c0 = arith.constant 0 : index
    %c0_0 = arith.constant 0 : index
    %0 = vector.load %arg1[%c0, %c0_0] : memref<8x93xf32, #tpu.memory_space<vmem>>, vector<8x93xf32>
    %c0_1 = arith.constant 0 : index
    %c0_2 = arith.constant 0 : index
    %1 = vector.load %arg2[%c0_1, %c0_2] : memref<93x32xf32, #tpu.memory_space<vmem>>, vector<93x32xf32>
    %cst = arith.constant dense<0.000000e+00> : vector<8x32xf32>
    %2 = tpu.matmul %0, %1, %cst {dimension_numbers = #tpu.dot_dimension_numbers<[1], [0], [0], [1], [0, 0, 1, 1], [], []>} : vector<8x93xf32>, vector<93x32xf32>, vector<8x32xf32> -> vector<8x32xf32>
    %c0_3 = arith.constant 0 : index
    %c0_4 = arith.constant 0 : index
    %3 = vector.load %arg3[%c0_3, %c0_4] : memref<1x32xf32, #tpu.memory_space<vmem>>, vector<1x32xf32>
    %4 = vector.broadcast %3 : vector<1x32xf32> to vector<8x32xf32>
    %5 = arith.addf %2, %4 : vector<8x32xf32>
    %cst_5 = arith.constant 0.000000e+00 : f32
    %6 = vector.broadcast %cst_5 : f32 to vector<8x32xf32>
    %7 = arith.maximumf %5, %6 : vector<8x32xf32>
    %c0_6 = arith.constant 0 : index
    %c0_7 = arith.constant 0 : index
    %8 = vector.load %arg4[%c0_6, %c0_7] : memref<32x64xf32, #tpu.memory_space<vmem>>, vector<32x64xf32>
    %cst_8 = arith.constant dense<0.000000e+00> : vector<8x64xf32>
    %9 = tpu.matmul %7, %8, %cst_8 {dimension_numbers = #tpu.dot_dimension_numbers<[1], [0], [0], [1], [0, 0, 1, 1], [], []>} : vector<8x32xf32>, vector<32x64xf32>, vector<8x64xf32> -> vector<8x64xf32>
    %c0_9 = arith.constant 0 : index
    %c0_10 = arith.constant 0 : index
    %10 = vector.load %arg5[%c0_9, %c0_10] : memref<1x64xf32, #tpu.memory_space<vmem>>, vector<1x64xf32>
    %11 = vector.broadcast %10 : vector<1x64xf32> to vector<8x64xf32>
    %12 = arith.addf %9, %11 : vector<8x64xf32>
    %cst_11 = arith.constant 0.000000e+00 : f32
    %13 = vector.broadcast %cst_11 : f32 to vector<8x64xf32>
    %14 = arith.maximumf %12, %13 : vector<8x64xf32>
    %c0_12 = arith.constant 0 : index
    %c0_13 = arith.constant 0 : index
    %15 = vector.load %arg6[%c0_12, %c0_13] : memref<64x32xf32, #tpu.memory_space<vmem>>, vector<64x32xf32>
    %cst_14 = arith.constant dense<0.000000e+00> : vector<8x32xf32>
    %16 = tpu.matmul %14, %15, %cst_14 {dimension_numbers = #tpu.dot_dimension_numbers<[1], [0], [0], [1], [0, 0, 1, 1], [], []>} : vector<8x64xf32>, vector<64x32xf32>, vector<8x32xf32> -> vector<8x32xf32>
    %c0_15 = arith.constant 0 : index
    %c0_16 = arith.constant 0 : index
    %17 = vector.load %arg7[%c0_15, %c0_16] : memref<1x32xf32, #tpu.memory_space<vmem>>, vector<1x32xf32>
    %18 = vector.broadcast %17 : vector<1x32xf32> to vector<8x32xf32>
    %19 = arith.addf %16, %18 : vector<8x32xf32>
    %cst_17 = arith.constant 0.000000e+00 : f32
    %20 = vector.broadcast %cst_17 : f32 to vector<8x32xf32>
    %21 = arith.maximumf %19, %20 : vector<8x32xf32>
    %c0_18 = arith.constant 0 : index
    %c0_19 = arith.constant 0 : index
    %22 = vector.load %arg8[%c0_18, %c0_19] : memref<32x9xf32, #tpu.memory_space<vmem>>, vector<32x9xf32>
    %cst_20 = arith.constant dense<0.000000e+00> : vector<8x9xf32>
    %23 = tpu.matmul %21, %22, %cst_20 {dimension_numbers = #tpu.dot_dimension_numbers<[1], [0], [0], [1], [0, 0, 1, 1], [], []>} : vector<8x32xf32>, vector<32x9xf32>, vector<8x9xf32> -> vector<8x9xf32>
    %c0_21 = arith.constant 0 : index
    %c0_22 = arith.constant 0 : index
    %24 = vector.load %arg9[%c0_21, %c0_22] : memref<1x9xf32, #tpu.memory_space<vmem>>, vector<1x9xf32>
    %25 = vector.broadcast %24 : vector<1x9xf32> to vector<8x9xf32>
    %26 = arith.addf %23, %25 : vector<8x9xf32>
    %c0_23 = arith.constant 0 : index
    %c0_24 = arith.constant 0 : index
    %27 = vector.load %arg10[%c0_23, %c0_24] : memref<8x9xf32, #tpu.memory_space<vmem>>, vector<8x9xf32>
    tpu.vector_store %arg10[%c0_23, %c0_24], %26 {strides = array<i32>} : memref<8x9xf32, #tpu.memory_space<vmem>>, vector<8x9xf32>,
    %cst_25 = arith.constant dense<0xFF800000> : vector<8xf32>
    %28 = vector.multi_reduction <maximumf>, %26, %cst_25 [1] : vector<8x9xf32> to vector<8xf32>
    %29 = vector.shape_cast %28 : vector<8xf32> to vector<8x1xf32>
    %30 = vector.broadcast %29 : vector<8x1xf32> to vector<8x9xf32>
    %31 = arith.subf %26, %30 : vector<8x9xf32>
    %32 = math.exp %31 : vector<8x9xf32>
    %cst_26 = arith.constant dense<0.000000e+00> : vector<8xf32>
    %33 = vector.multi_reduction <add>, %32, %cst_26 [1] : vector<8x9xf32> to vector<8xf32>
    %34 = vector.shape_cast %33 : vector<8xf32> to vector<8x1xf32>
    %35 = vector.broadcast %34 : vector<8x1xf32> to vector<8x9xf32>
    %36 = arith.divf %32, %35 : vector<8x9xf32>
    %c0_27 = arith.constant 0 : index
    %c0_28 = arith.constant 0 : index
    %37 = vector.load %arg11[%c0_27, %c0_28] : memref<8x9xf32, #tpu.memory_space<vmem>>, vector<8x9xf32>
    tpu.vector_store %arg11[%c0_27, %c0_28], %36 {strides = array<i32>} : memref<8x9xf32, #tpu.memory_space<vmem>>, vector<8x9xf32>,
    return
  }
  func.func @transform_0(%arg0: i32) -> (i32, i32) {
    %c0_i32 = arith.constant 0 : i32
    %c0_i32_0 = arith.constant 0 : i32
    return %arg0, %c0_i32 : i32, i32
  }
  func.func @transform_1(%arg0: i32) -> (i32, i32) {
    %c0_i32 = arith.constant 0 : i32
    %c0_i32_0 = arith.constant 0 : i32
    %c0_i32_1 = arith.constant 0 : i32
    return %c0_i32, %c0_i32_0 : i32, i32
  }
  func.func @transform_2(%arg0: i32) -> (i32, i32) {
    %c0_i32 = arith.constant 0 : i32
    %c0_i32_0 = arith.constant 0 : i32
    %c0_i32_1 = arith.constant 0 : i32
    return %c0_i32, %c0_i32_0 : i32, i32
  }
  func.func @transform_3(%arg0: i32) -> (i32, i32) {
    %c0_i32 = arith.constant 0 : i32
    %c0_i32_0 = arith.constant 0 : i32
    %c0_i32_1 = arith.constant 0 : i32
    return %c0_i32, %c0_i32_0 : i32, i32
  }
  func.func @transform_4(%arg0: i32) -> (i32, i32) {
    %c0_i32 = arith.constant 0 : i32
    %c0_i32_0 = arith.constant 0 : i32
    %c0_i32_1 = arith.constant 0 : i32
    return %c0_i32, %c0_i32_0 : i32, i32
  }
  func.func @transform_5(%arg0: i32) -> (i32, i32) {
    %c0_i32 = arith.constant 0 : i32
    %c0_i32_0 = arith.constant 0 : i32
    %c0_i32_1 = arith.constant 0 : i32
    return %c0_i32, %c0_i32_0 : i32, i32
  }
  func.func @transform_6(%arg0: i32) -> (i32, i32) {
    %c0_i32 = arith.constant 0 : i32
    %c0_i32_0 = arith.constant 0 : i32
    %c0_i32_1 = arith.constant 0 : i32
    return %c0_i32, %c0_i32_0 : i32, i32
  }
  func.func @transform_7(%arg0: i32) -> (i32, i32) {
    %c0_i32 = arith.constant 0 : i32
    %c0_i32_0 = arith.constant 0 : i32
    %c0_i32_1 = arith.constant 0 : i32
    return %c0_i32, %c0_i32_0 : i32, i32
  }
  func.func @transform_8(%arg0: i32) -> (i32, i32) {
    %c0_i32 = arith.constant 0 : i32
    %c0_i32_0 = arith.constant 0 : i32
    %c0_i32_1 = arith.constant 0 : i32
    return %c0_i32, %c0_i32_0 : i32, i32
  }
  func.func @transform_9(%arg0: i32) -> (i32, i32) {
    %c0_i32 = arith.constant 0 : i32
    %c0_i32_0 = arith.constant 0 : i32
    return %arg0, %c0_i32 : i32, i32
  }
  func.func @transform_10(%arg0: i32) -> (i32, i32) {
    %c0_i32 = arith.constant 0 : i32
    %c0_i32_0 = arith.constant 0 : i32
    return %arg0, %c0_i32 : i32, i32
  }
}

</mosaic_0001>

<llo_original>
// kernel: otto_forward.1
$region0: #{otto_forward.1}
  #allocation0 [shape = 'u32[]', space=smem, size = 0x4, offset = 0x4, fixed_abs, tag = 'smem constant byte address 0x4 - core index']
  #allocation1 [shape = 'u32[144,128]{1,0:T(1,128)}', space=vmem, size = 0x12000, scoped, tag = 'internal scratch']
  %s0 = inlined_call_operand.vmem [shape: f32[8,93], index: 0, kind: input, shape index: {}]
  %s1 = inlined_call_operand.vmem [shape: f32[93,32], index: 1, kind: input, shape index: {}]
  %s2 = inlined_call_operand.vmem [shape: f32[1,32], index: 2, kind: input, shape index: {}]
  %s3 = inlined_call_operand.vmem [shape: f32[32,64], index: 3, kind: input, shape index: {}]
  %s4 = inlined_call_operand.vmem [shape: f32[1,64], index: 4, kind: input, shape index: {}]
  %s5 = inlined_call_operand.vmem [shape: f32[64,32], index: 5, kind: input, shape index: {}]
  %s6 = inlined_call_operand.vmem [shape: f32[1,32], index: 6, kind: input, shape index: {}]
  %s7 = inlined_call_operand.vmem [shape: f32[32,9], index: 7, kind: input, shape index: {}]
  %s8 = inlined_call_operand.vmem [shape: f32[1,9], index: 8, kind: input, shape index: {}]
  %s9 = inlined_call_operand.hbm [shape: f32[8,9], index: 9, kind: output, shape index: {0}]
  %s10 = inlined_call_operand.hbm [shape: f32[8,9], index: 10, kind: output, shape index: {1}]
  %11 = xla_tuple %s9, %s10
  %s12 = sld [smem:[#allocation0]]
  $region54: #{otto_forward.1} parent=0
    _
  %s14 = ssub.s32 1, %s12
  %s15 = scalar_select 0, %s14, %s12
  $region1: #{otto_forward.1} parent=0
    #allocation2 [shape = 'u8[4096]{0}', space=vmem, size = 0x1000, scoped, tag = 'output window, operand 0, single buffered']
    #allocation3 [shape = 's32[1]{0}', space=sflag, size = 0x4, scoped, tag = 'scoped memory for otto_forward.1']
    #allocation4 [shape = 'u8[4096]{0}', space=vmem, size = 0x1000, scoped, tag = 'output window, operand 1, single buffered']
    #allocation5 [shape = 's32[1]{0}', space=sflag, size = 0x4, scoped, tag = 'scoped memory for otto_forward.1']
    %16 = vsyncpa [#allocation3], 0
    %17 = vsyncpa [#allocation5], 0
    // Predicated region
    $region2: #{otto_forward.1} parent=1 // pred_check
      _
    $region3: #{otto_forward.1} parent=1 // pred_check_branch
      %19 = sbr.rel (0) target = $region5
    $region4: #{otto_forward.1} parent=1 // pred_region
      _
    $region5: #{otto_forward.1} parent=1 // pred_fallthru
      _
    // Predicated region
    $region6: #{otto_forward.1} parent=1 // pred_check
      _
    $region7: #{otto_forward.1} parent=1 // pred_check_branch
      %21 = sbr.rel (0) target = $region9
    $region8: #{otto_forward.1} parent=1 // pred_region
      _
    $region9: #{otto_forward.1} parent=1 // pred_fallthru
      _
    // Predicated region
    $region10: #{otto_forward.1} parent=1 // pred_check
      _
    $region11: #{otto_forward.1} parent=1 // pred_check_branch
      %23 = sbr.rel (0) target = $region13
    $region12: #{otto_forward.1} parent=1 // pred_region
      _
    $region13: #{otto_forward.1} parent=1 // pred_fallthru
      _
    // Predicated region
    $region14: #{otto_forward.1} parent=1 // pred_check
      _
    $region15: #{otto_forward.1} parent=1 // pred_check_branch
      %25 = sbr.rel (0) target = $region17
    $region16: #{otto_forward.1} parent=1 // pred_region
      _
    $region17: #{otto_forward.1} parent=1 // pred_fallthru
      _
    // Predicated region
    $region18: #{otto_forward.1} parent=1 // pred_check
      _
    $region19: #{otto_forward.1} parent=1 // pred_check_branch
      %27 = sbr.rel (0) target = $region21
    $region20: #{otto_forward.1} parent=1 // pred_region
      _
    $region21: #{otto_forward.1} parent=1 // pred_fallthru
      _
    // Predicated region
    $region22: #{otto_forward.1} parent=1 // pred_check
      _
    $region23: #{otto_forward.1} parent=1 // pred_check_branch
      %29 = sbr.rel (0) target = $region25
    $region24: #{otto_forward.1} parent=1 // pred_region
      _
    $region25: #{otto_forward.1} parent=1 // pred_fallthru
      _
    // Predicated region
    $region26: #{otto_forward.1} parent=1 // pred_check
      _
    $region27: #{otto_forward.1} parent=1 // pred_check_branch
      %31 = sbr.rel (0) target = $region29
    $region28: #{otto_forward.1} parent=1 // pred_region
      _
    $region29: #{otto_forward.1} parent=1 // pred_fallthru
      _
    // Predicated region
    $region30: #{otto_forward.1} parent=1 // pred_check
      _
    $region31: #{otto_forward.1} parent=1 // pred_check_branch
      %33 = sbr.rel (0) target = $region33
    $region32: #{otto_forward.1} parent=1 // pred_region
      _
    $region33: #{otto_forward.1} parent=1 // pred_fallthru
      _
    // Predicated region
    $region34: #{otto_forward.1} parent=1 // pred_check
      _
    $region35: #{otto_forward.1} parent=1 // pred_check_branch
      %35 = sbr.rel (0) target = $region37
    $region36: #{otto_forward.1} parent=1 // pred_region
      _
    $region37: #{otto_forward.1} parent=1 // pred_fallthru
      _
    %v36 = vld [vmem:[%s0] sm:$0xff]
    %v37 = vld [vmem:[%s1] sm:$0xff]
    %v38 = vld [vmem:[%s1 + $0x8] sm:$0xff]
    %v39 = vld [vmem:[%s1 + $0x10] sm:$0xff]
    %v40 = vld [vmem:[%s1 + $0x18] sm:$0xff]
    %v41 = vld [vmem:[%s1 + $0x20] sm:$0xff]
    %v42 = vld [vmem:[%s1 + $0x28] sm:$0xff]
    %v43 = vld [vmem:[%s1 + $0x30] sm:$0xff]
    %v44 = vld [vmem:[%s1 + $0x38] sm:$0xff]
    %v45 = vld [vmem:[%s1 + $0x40] sm:$0xff]
    %v46 = vld [vmem:[%s1 + $0x48] sm:$0xff]
    %v47 = vld [vmem:[%s1 + $0x50] sm:$0xff]
    %v48 = vld [vmem:[%s1 + $0x58] sm:$0x1f]
    %v49 = vld [vmem:[%s2] sm:$0x1]
    %v51 = vlaneseq
    %v52 = vshrl.u32 %v51, 7
    %v53 = vsub.s32 0, %v52
    %v54 = vrot.slane %v49, %v53
    %vm56 = vcmask 760832
    %v58 = vsel %vm56, %v36, 0
    %vm60 = vcmask 1044480
    %v62 = vsel %vm60, %v48, 0
    %64 = vmatprep.subr.mxu0 0.0
    %65 = vmatpush1.msra.mxu0 %v37
    %66 = vmatprep.subr.mxu0 0.0
    %67 = vmatpush1.msra.mxu0 %v38
    %68 = vmatprep.subr.mxu0 0.0
    %69 = vmatpush1.msra.mxu0 %v39
    %70 = vmatprep.subr.mxu0 0.0
    %71 = vmatpush1.msra.mxu0 %v40
    %72 = vmatprep.subr.mxu0 0.0
    %73 = vmatpush1.msra.mxu0 %v41
    %74 = vmatprep.subr.mxu0 0.0
    %75 = vmatpush1.msra.mxu0 %v42
    %76 = vmatprep.subr.mxu0 0.0
    %77 = vmatpush1.msra.mxu0 %v43
    %78 = vmatprep.subr.mxu0 0.0
    %79 = vmatpush1.msra.mxu0 %v44
    %80 = vmatprep.subr.mxu0 0.0
    %81 = vmatpush1.msra.mxu0 %v45
    %82 = vmatprep.subr.mxu0 0.0
    %83 = vmatpush1.msra.mxu0 %v46
    %84 = vmatprep.subr.mxu0 0.0
    %85 = vmatpush1.msra.mxu0 %v47
    %86 = vmatprep.subr.mxu0 0.0
    %87 = vmatpush1.msra.mxu0 %v62
    %88 = vmatprep.subr.mxu0 0.0
    %89 = vmatpush1.msra.mxu0 0.0
    %90 = vmatprep.subr.mxu0 0.0
    %91 = vmatpush1.msra.mxu0 0.0
    %92 = vmatprep.subr.mxu0 0.0
    %93 = vmatpush1.msra.mxu0 0.0
    %94 = vmatprep.subr.mxu0 0.0
    %95 = vmatpush1.msra.mxu0 0.0
    %96 = vmatprep.subr.mxu0 0.0
    %97 = vmatpush1.msra.mxu0 0.0
    %98 = vmatprep.subr.mxu0 0.0
    %99 = vmatpush1.msra.mxu0 0.0
    %100 = vmatprep.subr.mxu0 0.0
    %101 = vmatpush1.msra.mxu0 0.0
    %102 = vmatprep.subr.mxu0 0.0
    %103 = vmatpush1.msra.mxu0 0.0
    %104 = vmatprep.subr.mxu0 0.0
    %105 = vmatpush1.msra.mxu0 0.0
    %106 = vmatprep.subr.mxu0 0.0
    %107 = vmatpush1.msra.mxu0 0.0
    %108 = vmatprep.subr.mxu0 0.0
    %109 = vmatpush1.msra.mxu0 0.0
    %110 = vmatprep.subr.mxu0 0.0
    %111 = vmatpush1.msra.mxu0 0.0
    %112 = vmatprep.subr.mxu0 0.0
    %113 = vmatpush1.msra.mxu0 0.0
    %114 = vmatprep.subr.mxu0 0.0
    %115 = vmatpush1.msra.mxu0 0.0
    %116 = vmatprep.subr.mxu0 0.0
    %117 = vmatpush1.msra.mxu0 0.0
    %118 = vmatprep.subr.mxu0 0.0
    %119 = vmatpush1.msra.mxu0 0.0
    %120 = vmatprep.subr.mxu0 0.0
    %121 = vmatpush1.msra.mxu0 0.0
    %122 = vmatprep.subr.mxu0 0.0
    %123 = vmatpush1.msra.mxu0 0.0
    %124 = vmatprep.subr.mxu0 0.0
    %125 = vmatpush1.msra.mxu0 0.0
    %126 = vmatprep.subr.mxu0 0.0
    %127 = vmatpush1.msra.mxu0 0.0
    %128 = vmatprep.mubr.f32.mxu0 0.0
    %129 = vmatmul.mubr.f32.gmra.mrb[0].mxu0 %v58
    %v130 = vpop.f32.mrb[0].mxu0
    %v131 = vadd.f32 %v54, %v130
    %v132 = vpop.f32.mrb[0].mxu0
    %133 = vdwg.mxu0
    %v134 = vmax.f32 %v131, 0.0
    %v135 = vld [vmem:[%s3] sm:$0xff]
    %v136 = vld [vmem:[%s3 + $0x8] sm:$0xff]
    %v137 = vld [vmem:[%s3 + $0x10] sm:$0xff]
    %v138 = vld [vmem:[%s3 + $0x18] sm:$0xff]
    %v139 = vld [vmem:[%s4] sm:$0x1]
    %v141 = vlaneseq
    %v142 = vshrl.u32 %v141, 7
    %v143 = vsub.s32 0, %v142
    %v144 = vrot.slane %v139, %v143
    %vm146 = vcmask 261120
    %v148 = vsel %vm146, %v134, 0
    %150 = vmatprep.subr.mxu0 0.0
    %151 = vmatpush1.msra.mxu0 %v135
    %152 = vmatprep.subr.mxu0 0.0
    %153 = vmatpush1.msra.mxu0 %v136
    %154 = vmatprep.subr.mxu0 0.0
    %155 = vmatpush1.msra.mxu0 %v137
    %156 = vmatprep.subr.mxu0 0.0
    %157 = vmatpush1.msra.mxu0 %v138
    %158 = vmatprep.subr.mxu0 0.0
    %159 = vmatpush1.msra.mxu0 0.0
    %160 = vmatprep.subr.mxu0 0.0
    %161 = vmatpush1.msra.mxu0 0.0
    %162 = vmatprep.subr.mxu0 0.0
    %163 = vmatpush1.msra.mxu0 0.0
    %164 = vmatprep.subr.mxu0 0.0
    %165 = vmatpush1.msra.mxu0 0.0
    %166 = vmatprep.subr.mxu0 0.0
    %167 = vmatpush1.msra.mxu0 0.0
    %168 = vmatprep.subr.mxu0 0.0
    %169 = vmatpush1.msra.mxu0 0.0
    %170 = vmatprep.subr.mxu0 0.0
    %171 = vmatpush1.msra.mxu0 0.0
    %172 = vmatprep.subr.mxu0 0.0
    %173 = vmatpush1.msra.mxu0 0.0
    %174 = vmatprep.subr.mxu0 0.0
    %175 = vmatpush1.msra.mxu0 0.0
    %176 = vmatprep.subr.mxu0 0.0
    %177 = vmatpush1.msra.mxu0 0.0
    %178 = vmatprep.subr.mxu0 0.0
    %179 = vmatpush1.msra.mxu0 0.0
    %180 = vmatprep.subr.mxu0 0.0
    %181 = vmatpush1.msra.mxu0 0.0
    %182 = vmatprep.subr.mxu0 0.0
    %183 = vmatpush1.msra.mxu0 0.0
    %184 = vmatprep.subr.mxu0 0.0
    %185 = vmatpush1.msra.mxu0 0.0
    %186 = vmatprep.subr.mxu0 0.0
    %187 = vmatpush1.msra.mxu0 0.0
    %188 = vmatprep.subr.mxu0 0.0
    %189 = vmatpush1.msra.mxu0 0.0
    %190 = vmatprep.subr.mxu0 0.0
    %191 = vmatpush1.msra.mxu0 0.0
    %192 = vmatprep.subr.mxu0 0.0
    %193 = vmatpush1.msra.mxu0 0.0
    %194 = vmatprep.subr.mxu0 0.0
    %195 = vmatpush1.msra.mxu0 0.0
    %196 = vmatprep.subr.mxu0 0.0
    %197 = vmatpush1.msra.mxu0 0.0
    %198 = vmatprep.subr.mxu0 0.0
    %199 = vmatpush1.msra.mxu0 0.0
    %200 = vmatprep.subr.mxu0 0.0
    %201 = vmatpush1.msra.mxu0 0.0
    %202 = vmatprep.subr.mxu0 0.0
    %203 = vmatpush1.msra.mxu0 0.0
    %204 = vmatprep.subr.mxu0 0.0
    %205 = vmatpush1.msra.mxu0 0.0
    %206 = vmatprep.subr.mxu0 0.0
    %207 = vmatpush1.msra.mxu0 0.0
    %208 = vmatprep.subr.mxu0 0.0
    %209 = vmatpush1.msra.mxu0 0.0
    %210 = vmatprep.subr.mxu0 0.0
    %211 = vmatpush1.msra.mxu0 0.0
    %212 = vmatprep.subr.mxu0 0.0
    %213 = vmatpush1.msra.mxu0 0.0
    %214 = vmatprep.mubr.f32.mxu0 0.0
    %215 = vmatmul.mubr.f32.gmra.mrb[0].mxu0 %v148
    %v216 = vpop.f32.mrb[0].mxu0
    %v217 = vadd.f32 %v144, %v216
    %v218 = vpop.f32.mrb[0].mxu0
    %219 = vdwg.mxu0
    %v220 = vmax.f32 %v217, 0.0
    %v221 = vld [vmem:[%s5] sm:$0xff]
    %v222 = vld [vmem:[%s5 + $0x8] sm:$0xff]
    %v223 = vld [vmem:[%s5 + $0x10] sm:$0xff]
    %v224 = vld [vmem:[%s5 + $0x18] sm:$0xff]
    %v225 = vld [vmem:[%s5 + $0x20] sm:$0xff]
    %v226 = vld [vmem:[%s5 + $0x28] sm:$0xff]
    %v227 = vld [vmem:[%s5 + $0x30] sm:$0xff]
    %v228 = vld [vmem:[%s5 + $0x38] sm:$0xff]
    %v229 = vld [vmem:[%s6] sm:$0x1]
    %v231 = vlaneseq
    %v232 = vshrl.u32 %v231, 7
    %v233 = vsub.s32 0, %v232
    %v234 = vrot.slane %v229, %v233
    %vm236 = vcmask 523264
    %v238 = vsel %vm236, %v220, 0
    %240 = vmatprep.subr.mxu0 0.0
    %241 = vmatpush1.msra.mxu0 %v221
    %242 = vmatprep.subr.mxu0 0.0
    %243 = vmatpush1.msra.mxu0 %v222
    %244 = vmatprep.subr.mxu0 0.0
    %245 = vmatpush1.msra.mxu0 %v223
    %246 = vmatprep.subr.mxu0 0.0
    %247 = vmatpush1.msra.mxu0 %v224
    %248 = vmatprep.subr.mxu0 0.0
    %249 = vmatpush1.msra.mxu0 %v225
    %250 = vmatprep.subr.mxu0 0.0
    %251 = vmatpush1.msra.mxu0 %v226
    %252 = vmatprep.subr.mxu0 0.0
    %253 = vmatpush1.msra.mxu0 %v227
    %254 = vmatprep.subr.mxu0 0.0
    %255 = vmatpush1.msra.mxu0 %v228
    %256 = vmatprep.subr.mxu0 0.0
    %257 = vmatpush1.msra.mxu0 0.0
    %258 = vmatprep.subr.mxu0 0.0
    %259 = vmatpush1.msra.mxu0 0.0
    %260 = vmatprep.subr.mxu0 0.0
    %261 = vmatpush1.msra.mxu0 0.0
    %262 = vmatprep.subr.mxu0 0.0
    %263 = vmatpush1.msra.mxu0 0.0
    %264 = vmatprep.subr.mxu0 0.0
    %265 = vmatpush1.msra.mxu0 0.0
    %266 = vmatprep.subr.mxu0 0.0
    %267 = vmatpush1.msra.mxu0 0.0
    %268 = vmatprep.subr.mxu0 0.0
    %269 = vmatpush1.msra.mxu0 0.0
    %270 = vmatprep.subr.mxu0 0.0
    %271 = vmatpush1.msra.mxu0 0.0
    %272 = vmatprep.subr.mxu0 0.0
    %273 = vmatpush1.msra.mxu0 0.0
    %274 = vmatprep.subr.mxu0 0.0
    %275 = vmatpush1.msra.mxu0 0.0
    %276 = vmatprep.subr.mxu0 0.0
    %277 = vmatpush1.msra.mxu0 0.0
    %278 = vmatprep.subr.mxu0 0.0
    %279 = vmatpush1.msra.mxu0 0.0
    %280 = vmatprep.subr.mxu0 0.0
    %281 = vmatpush1.msra.mxu0 0.0
    %282 = vmatprep.subr.mxu0 0.0
    %283 = vmatpush1.msra.mxu0 0.0
    %284 = vmatprep.subr.mxu0 0.0
    %285 = vmatpush1.msra.mxu0 0.0
    %286 = vmatprep.subr.mxu0 0.0
    %287 = vmatpush1.msra.mxu0 0.0
    %288 = vmatprep.subr.mxu0 0.0
    %289 = vmatpush1.msra.mxu0 0.0
    %290 = vmatprep.subr.mxu0 0.0
    %291 = vmatpush1.msra.mxu0 0.0
    %292 = vmatprep.subr.mxu0 0.0
    %293 = vmatpush1.msra.mxu0 0.0
    %294 = vmatprep.subr.mxu0 0.0
    %295 = vmatpush1.msra.mxu0 0.0
    %296 = vmatprep.subr.mxu0 0.0
    %297 = vmatpush1.msra.mxu0 0.0
    %298 = vmatprep.subr.mxu0 0.0
    %299 = vmatpush1.msra.mxu0 0.0
    %300 = vmatprep.subr.mxu0 0.0
    %301 = vmatpush1.msra.mxu0 0.0
    %302 = vmatprep.subr.mxu0 0.0
    %303 = vmatpush1.msra.mxu0 0.0
    %304 = vmatprep.mubr.f32.mxu0 0.0
    %305 = vmatmul.mubr.f32.gmra.mrb[0].mxu0 %v238
    %v306 = vpop.f32.mrb[0].mxu0
    %v307 = vadd.f32 %v234, %v306
    %v308 = vpop.f32.mrb[0].mxu0
    %309 = vdwg.mxu0
    %v310 = vmax.f32 %v307, 0.0
    %v311 = vld [vmem:[%s7] sm:$0xff]
    %v312 = vld [vmem:[%s7 + $0x8] sm:$0xff]
    %v313 = vld [vmem:[%s7 + $0x10] sm:$0xff]
    %v314 = vld [vmem:[%s7 + $0x18] sm:$0xff]
    %v315 = vld [vmem:[%s8] sm:$0x1]
    %v317 = vlaneseq
    %v318 = vshrl.u32 %v317, 7
    %v319 = vsub.s32 0, %v318
    %v320 = vrot.slane %v315, %v319
    %v323 = vsel %vm146, %v310, 0
    %325 = vmatprep.subr.mxu0 0.0
    %326 = vmatpush1.msra.mxu0 %v311
    %327 = vmatprep.subr.mxu0 0.0
    %328 = vmatpush1.msra.mxu0 %v312
    %329 = vmatprep.subr.mxu0 0.0
    %330 = vmatpush1.msra.mxu0 %v313
    %331 = vmatprep.subr.mxu0 0.0
    %332 = vmatpush1.msra.mxu0 %v314
    %333 = vmatprep.subr.mxu0 0.0
    %334 = vmatpush1.msra.mxu0 0.0
    %335 = vmatprep.subr.mxu0 0.0
    %336 = vmatpush1.msra.mxu0 0.0
    %337 = vmatprep.subr.mxu0 0.0
    %338 = vmatpush1.msra.mxu0 0.0
    %339 = vmatprep.subr.mxu0 0.0
    %340 = vmatpush1.msra.mxu0 0.0
    %341 = vmatprep.subr.mxu0 0.0
    %342 = vmatpush1.msra.mxu0 0.0
    %343 = vmatprep.subr.mxu0 0.0
    %344 = vmatpush1.msra.mxu0 0.0
    %345 = vmatprep.subr.mxu0 0.0
    %346 = vmatpush1.msra.mxu0 0.0
    %347 = vmatprep.subr.mxu0 0.0
    %348 = vmatpush1.msra.mxu0 0.0
    %349 = vmatprep.subr.mxu0 0.0
    %350 = vmatpush1.msra.mxu0 0.0
    %351 = vmatprep.subr.mxu0 0.0
    %352 = vmatpush1.msra.mxu0 0.0
    %353 = vmatprep.subr.mxu0 0.0
    %354 = vmatpush1.msra.mxu0 0.0
    %355 = vmatprep.subr.mxu0 0.0
    %356 = vmatpush1.msra.mxu0 0.0
    %357 = vmatprep.subr.mxu0 0.0
    %358 = vmatpush1.msra.mxu0 0.0
    %359 = vmatprep.subr.mxu0 0.0
    %360 = vmatpush1.msra.mxu0 0.0
    %361 = vmatprep.subr.mxu0 0.0
    %362 = vmatpush1.msra.mxu0 0.0
    %363 = vmatprep.subr.mxu0 0.0
    %364 = vmatpush1.msra.mxu0 0.0
    %365 = vmatprep.subr.mxu0 0.0
    %366 = vmatpush1.msra.mxu0 0.0
    %367 = vmatprep.subr.mxu0 0.0
    %368 = vmatpush1.msra.mxu0 0.0
    %369 = vmatprep.subr.mxu0 0.0
    %370 = vmatpush1.msra.mxu0 0.0
    %371 = vmatprep.subr.mxu0 0.0
    %372 = vmatpush1.msra.mxu0 0.0
    %373 = vmatprep.subr.mxu0 0.0
    %374 = vmatpush1.msra.mxu0 0.0
    %375 = vmatprep.subr.mxu0 0.0
    %376 = vmatpush1.msra.mxu0 0.0
    %377 = vmatprep.subr.mxu0 0.0
    %378 = vmatpush1.msra.mxu0 0.0
    %379 = vmatprep.subr.mxu0 0.0
    %380 = vmatpush1.msra.mxu0 0.0
    %381 = vmatprep.subr.mxu0 0.0
    %382 = vmatpush1.msra.mxu0 0.0
    %383 = vmatprep.subr.mxu0 0.0
    %384 = vmatpush1.msra.mxu0 0.0
    %385 = vmatprep.subr.mxu0 0.0
    %386 = vmatpush1.msra.mxu0 0.0
    %387 = vmatprep.subr.mxu0 0.0
    %388 = vmatpush1.msra.mxu0 0.0
    %389 = vmatprep.mubr.f32.mxu0 0.0
    %390 = vmatmul.mubr.f32.gmra.mrb[0].mxu0 %v323
    %v391 = vpop.f32.mrb[0].mxu0
    %v392 = vadd.f32 %v320, %v391
    %v393 = vpop.f32.mrb[0].mxu0
    %394 = vdwg.mxu0
    %vm395 = vcmask 72704
    %396 = vst.msk [vmem:[#allocation2] sm:$0xff] %vm395, %v392
    %v397 = vsel %vm395, %v392, -inf
    %398 = vmax.xlane.f32.xlu0 %v397
    %v399 = vpop.xlane.xlu0 %398
    %v400 = vsub.f32 %v392, %v399
    %v401 = vmul.f32 %v400, 1.442695
    %v402 = vpow.pop %v401
    %v403 = vsel %vm395, %v402, 0.0
    %404 = vadd.xlane.f32.xlu0 %v403
    %v405 = vpop.xlane.xlu0 %404
    %v406 = vrcp.pop %v405
    %v407 = vmul.f32 %v402, %v406
    %408 = vst.msk [vmem:[#allocation4] sm:$0xff] %vm395, %v407
    // Predicated region
    $region38: #{otto_forward.1} parent=1 // pred_check
      _
    $region39: #{otto_forward.1} parent=1 // pred_check_branch
      %410 = sbr.rel (0) target = $region41
    $region40: #{otto_forward.1} parent=1 // pred_region
      %s412 = ssub.s32 128, 128
      %413 = vsyncadd [#allocation3], %s412
      %s415 = sshll.u32 [#allocation2], 4
      %s416 = int_to_ptr.vmem [resolvable:$true] %s415
      %418 = dma.vmem_to_hbm [thread:$0]  %s416, 128, %s9, [#allocation3]
    $region41: #{otto_forward.1} parent=1 // pred_fallthru
      _
    // Predicated region
    $region42: #{otto_forward.1} parent=1 // pred_check
      _
    $region43: #{otto_forward.1} parent=1 // pred_check_branch
      %420 = sbr.rel (0) target = $region45
    $region44: #{otto_forward.1} parent=1 // pred_region
      %s422 = ssub.s32 128, 128
      %423 = vsyncadd [#allocation5], %s422
      %s425 = sshll.u32 [#allocation4], 4
      %s426 = int_to_ptr.vmem [resolvable:$true] %s425
      %428 = dma.vmem_to_hbm [thread:$0]  %s426, 128, %s10, [#allocation5]
    $region45: #{otto_forward.1} parent=1 // pred_fallthru
      _
    // Predicated region
    $region46: #{otto_forward.1} parent=1 // pred_check
      _
    $region47: #{otto_forward.1} parent=1 // pred_check_branch
      %430 = sbr.rel (0) target = $region49
    $region48: #{otto_forward.1} parent=1 // pred_region
      %431 = dma.done [#allocation3], 128
    $region49: #{otto_forward.1} parent=1 // pred_fallthru
      _
    // Predicated region
    $region50: #{otto_forward.1} parent=1 // pred_check
      _
    $region51: #{otto_forward.1} parent=1 // pred_check_branch
      %433 = sbr.rel (0) target = $region53
    $region52: #{otto_forward.1} parent=1 // pred_region
      %434 = dma.done [#allocation5], 128
    $region53: #{otto_forward.1} parent=1 // pred_fallthru
      _
    %435 = vsyncpa [#allocation3], 1
    %436 = vsyncpa [#allocation5], 1

</llo_original>
